<compile_context>
chip_gen: v7x
topology: tpu7x:2x2x1
jax: 0.10.0
libtpu: 0.0.40
codegen_flags: <defaults>
</compile_context>

<pallas_src>
import math

import jax
import jax.numpy as jnp
from jax.experimental import pallas as pl
from jax.experimental.pallas import tpu as pltpu

GRID_SIZE = 10
HIDDEN = 10
INPUT = 6
OUTPUT = 2
BATCH = 8
LANES = 128

# Row offsets inside the packed (PACK_ROWS, 128) f32 parameter slab.
# Lane layout of the fused projection / comb block:
#   lanes 0:10  -> RNN half  (W_ih^T, b_ih + b_hh, rnn_out)
#   lanes 10:20 -> fc1 half  (W1^T,   b1,          lin_out)
# which matches torch.cat((rnn_out, lin_out), dim=1), so fc2's W2^T packs as-is.
_WIN_R = 0                      # rows 0:6    (6, 20)  [rnn W_ih^T | fc1 W^T]
_BIN_R = 6                      # row  6      (1, 20)  [b_ih + b_hh | fc1 b]
#                                 row  7      zero pad (sublane alignment)
_WHH_R = 8                      # rows 8:18   (10, 20) [rnn W_hh^T | zeros]
_W2_R = 18                      # rows 18:38  (20, 2)  fc2 W^T
_B2_R = 38                      # row  38     (1, 2)   fc2 b
PACK_ROWS = 40                  # padded to a multiple of 8


def _place_predictor_kernel(pos_ref, h0_ref, p_ref, out_ref, hout_ref):
    B = pos_ref.shape[0]        # compile-time constant (jit retraces per shape)
    H2 = 2 * HIDDEN
    G = float(GRID_SIZE)
    inv_g = 1.0 / G
    c5 = 5.0 * math.pi / (G * G)     # grid_cell freq 5 on already-normalized coords
    c1 = 1.0 * math.pi / (G * G)     # (double /G reproduced faithfully from torch)

    # ---- packed parameters: static slices of one VMEM slab (single DMA) ----
    w_in = p_ref[_WIN_R:_WIN_R + INPUT, 0:H2]        # (6, 20)
    b_in = p_ref[_BIN_R:_BIN_R + 1, 0:H2]            # (1, 20)
    whht = p_ref[_WHH_R:_WHH_R + HIDDEN, 0:H2]       # (10, 20), lanes 10:20 = 0
    w2t = p_ref[_W2_R:_W2_R + H2, 0:OUTPUT]          # (20, 2)
    b2 = p_ref[_B2_R:_B2_R + 1, 0:OUTPUT]            # (1, 2)

    # ---- fourier features: ONE cos + lane selects (no per-feature concat) ----
    pos = pos_ref[...]                               # (B, 2)
    x = pos[:, 0:1]
    y = pos[:, 1:2]
    lane6 = jax.lax.broadcasted_iota(jnp.int32, (B, INPUT), 1)
    xy = jnp.where((lane6 & 1) == 0, x, y)           # [x, y, x, y, x, y]
    scale = jnp.where(lane6 < 2, inv_g, jnp.where(lane6 < 4, c5, c1))
    args = xy * scale
    feats = jnp.where(lane6 < 2, args, 0.5 - 0.5 * jnp.cos(args))    # (B, 6)

    # ---- fc1 + RNN input projection fused into one MXU matmul ----
    proj = jnp.dot(feats, w_in, preferred_element_type=jnp.float32) + b_in   # (B, 20)
    # lanes 0:10 = feats @ W_ih^T + (b_ih + b_hh);  lanes 10:20 = lin_out

    # ---- unbatched nn.RNN semantics: tanh recurrence over the batch axis ----
    rows = jax.lax.broadcasted_iota(jnp.int32, (B, H2), 0)
    lanes = jax.lax.broadcasted_iota(jnp.int32, (B, H2), 1)
    rnn_lane = lanes < HIDDEN                        # loop-invariant, hoisted

    h = h0_ref[...]                                  # (1, 10)
    comb = proj                                      # lanes 10:20 already final
    for t in range(B):                               # fully unrolled (static)
        # (1,10)@(10,20): lanes 0:10 = h @ W_hh^T, lanes 10:20 = 0
        pre = proj[t:t + 1, :] + jnp.dot(h, whht, preferred_element_type=jnp.float32)
        h_full = jnp.tanh(pre)                       # lanes 0:10 = new hidden
        h = h_full[:, 0:HIDDEN]
        # Scatter the new hidden into row t / lanes 0:10 of comb with a masked
        # select; lanes 10:20 of row t keep lin_out. This sits off the serial
        # h dependency chain (no end-of-loop sublane-concat chain).
        comb = jnp.where((rows == t) & rnn_lane, h_full, comb)

    # ---- head: leaky_relu -> fc2 -> leaky_relu ----
    comb = jnp.maximum(comb, 0.01 * comb)
    out = jnp.dot(comb, w2t, preferred_element_type=jnp.float32) + b2
    out_ref[...] = jnp.maximum(out, 0.01 * out)      # (B, 2)
    hout_ref[...] = h                                # (1, 10)


def pack_params(params):
    """Pack all weights/biases (pre-transposed, lane-placed) into a single
    (40, 128) f32 slab.  Call ONCE whenever the parameters change and reuse
    the result across forward calls (keeps packing off the per-call path)."""

    def pad(a, rows):
        a = jnp.asarray(a, jnp.float32)
        return jnp.pad(a, ((0, rows - a.shape[0]), (0, LANES - a.shape[1])))

    w_in = jnp.concatenate(
        [jnp.asarray(params["wih"], jnp.float32).T,
         jnp.asarray(params["w1"], jnp.float32).T], axis=1)           # (6, 20)
    b_in = jnp.concatenate(
        [params["bih"] + params["bhh"], params["b1"]]).reshape(1, 2 * HIDDEN)
    pieces = [
        pad(w_in, _BIN_R - _WIN_R),                                   # rows 0:6
        pad(b_in, _WHH_R - _BIN_R),                                   # rows 6:8
        pad(jnp.asarray(params["whh"], jnp.float32).T, _W2_R - _WHH_R),  # 8:18
        pad(jnp.asarray(params["w2"], jnp.float32).T, _B2_R - _W2_R),    # 18:38
        pad(jnp.asarray(params["b2"], jnp.float32).reshape(1, OUTPUT),
            PACK_ROWS - _B2_R),                                       # rows 38:40
    ]
    return jnp.concatenate(pieces, axis=0)


@jax.jit
def _forward(position, h0, packed):
    B = position.shape[0]
    vmem = pl.BlockSpec(memory_space=pltpu.MemorySpace.VMEM)
    out, h = pl.pallas_call(
        _place_predictor_kernel,
        out_shape=(jax.ShapeDtypeStruct((B, OUTPUT), jnp.float32),
                   jax.ShapeDtypeStruct((1, HIDDEN), jnp.float32)),
        in_specs=[vmem, vmem, vmem],
        out_specs=(vmem, vmem),
    )(position.astype(jnp.float32), h0.astype(jnp.float32), packed)
    return out, h


def place_predictor_rnn(position, packed, h0=None):
    if h0 is None:
        h0 = jnp.zeros((1, HIDDEN), jnp.float32)
    return _forward(position, h0, packed)


def _reference(position, params, h0):
    """Pure-JAX reference matching the PyTorch forward."""
    G = float(GRID_SIZE)

    def gcell(v, f):
        return (1.0 - jnp.cos(f * math.pi * v / G)) / 2.0

    x = position[:, 0:1] / G
    y = position[:, 1:2] / G
    feats = jnp.concatenate(
        [x, y, gcell(x, 5.0), gcell(y, 5.0), gcell(x, 1.0), gcell(y, 1.0)], axis=1)

    lin = feats @ params["w1"].T + params["b1"]
    h = h0
    rows = []
    for t in range(position.shape[0]):
        h = jnp.tanh(feats[t:t + 1] @ params["wih"].T + params["bih"]
                     + h @ params["whh"].T + params["bhh"])
        rows.append(h)
    rnn_out = jnp.concatenate(rows, axis=0)

    def lrelu(v):
        return jnp.where(v >= 0.0, v, 0.01 * v)

    comb = lrelu(jnp.concatenate([rnn_out, lin], axis=1))
    out = lrelu(comb @ params["w2"].T + params["b2"])
    return out, h


def _init_params(key):
    ks = jax.random.split(key, 8)

    def uni(k, shape, bound):
        return jax.random.uniform(k, shape, jnp.float32, -bound, bound)

    # kaiming_uniform_(nonlinearity='leaky_relu', a=0): bound = sqrt(2)*sqrt(3/fan_in)
    kb1 = math.sqrt(2.0) * math.sqrt(3.0 / INPUT)
    kb2 = math.sqrt(2.0) * math.sqrt(3.0 / (2 * HIDDEN))
    stdv = 1.0 / math.sqrt(HIDDEN)
    return {
        "w1": uni(ks[0], (HIDDEN, INPUT), kb1),
        "b1": uni(ks[1], (HIDDEN,), 1.0 / math.sqrt(INPUT)),
        "w2": uni(ks[2], (OUTPUT, 2 * HIDDEN), kb2),
        "b2": uni(ks[3], (OUTPUT,), 1.0 / math.sqrt(2 * HIDDEN)),
        "wih": uni(ks[4], (HIDDEN, INPUT), stdv),
        "whh": uni(ks[5], (HIDDEN, HIDDEN), stdv),
        "bih": uni(ks[6], (HIDDEN,), stdv),
        "bhh": uni(ks[7], (HIDDEN,), stdv),
    }


if __name__ == "__main__":
    key = jax.random.PRNGKey(0)
    pkey, xkey = jax.random.split(key)
    params = _init_params(pkey)

    # One-time packing of the parameter slab (cached, reused every forward).
    packed = jax.block_until_ready(pack_params(params))

    position = jax.random.uniform(xkey, (BATCH, 2), jnp.float32) * GRID_SIZE
    h0 = jnp.zeros((1, HIDDEN), jnp.float32)

    out, h = place_predictor_rnn(position, packed, h0)
    out = jax.block_until_ready(out)
    h = jax.block_until_ready(h)

    ref_out, ref_h = _reference(position, params, h0)
    assert out.shape == (BATCH, OUTPUT) and h.shape == (1, HIDDEN)
    assert jnp.allclose(out, ref_out, atol=1e-5, rtol=1e-5)
    assert jnp.allclose(h, ref_h, atol=1e-5, rtol=1e-5)

    print("KERNEL_OK")
</pallas_src>

<mosaic_0001>
module attributes {stable_mosaic.version = 11 : i64} {
  func.func @_place_predictor_kernel(%arg0: memref<8x2xf32, #tpu.memory_space<vmem>>, %arg1: memref<1x10xf32, #tpu.memory_space<vmem>>, %arg2: memref<40x128xf32, #tpu.memory_space<vmem>>, %arg3: memref<8x2xf32, #tpu.memory_space<vmem>>, %arg4: memref<1x10xf32, #tpu.memory_space<vmem>>) attributes {dimension_semantics = [], scalar_prefetch = 0 : i64, scratch_operands = 0 : i64, tpu.core_type = #tpu.core_type<tc>} {
    %c0 = arith.constant 0 : index
    %c0_0 = arith.constant 0 : index
    %0 = vector.load %arg2[%c0, %c0_0] : memref<40x128xf32, #tpu.memory_space<vmem>>, vector<6x20xf32>
    %c6 = arith.constant 6 : index
    %c0_1 = arith.constant 0 : index
    %1 = vector.load %arg2[%c6, %c0_1] : memref<40x128xf32, #tpu.memory_space<vmem>>, vector<1x20xf32>
    %c8 = arith.constant 8 : index
    %c0_2 = arith.constant 0 : index
    %2 = vector.load %arg2[%c8, %c0_2] : memref<40x128xf32, #tpu.memory_space<vmem>>, vector<10x20xf32>
    %c18 = arith.constant 18 : index
    %c0_3 = arith.constant 0 : index
    %3 = vector.load %arg2[%c18, %c0_3] : memref<40x128xf32, #tpu.memory_space<vmem>>, vector<20x2xf32>
    %c38 = arith.constant 38 : index
    %c0_4 = arith.constant 0 : index
    %4 = vector.load %arg2[%c38, %c0_4] : memref<40x128xf32, #tpu.memory_space<vmem>>, vector<1x2xf32>
    %c0_5 = arith.constant 0 : index
    %c0_6 = arith.constant 0 : index
    %5 = vector.load %arg0[%c0_5, %c0_6] : memref<8x2xf32, #tpu.memory_space<vmem>>, vector<8x2xf32>
    %6 = vector.extract_strided_slice %5 {offsets = [0, 0], sizes = [8, 1], strides = [1, 1]} : vector<8x2xf32> to vector<8x1xf32>
    %7 = vector.extract_strided_slice %5 {offsets = [0, 1], sizes = [8, 1], strides = [1, 1]} : vector<8x2xf32> to vector<8x1xf32>
    %8 = tpu.iota {dimensions = array<i32: 1>} : vector<8x6xi32>
    %c1_i32 = arith.constant 1 : i32
    %9 = vector.broadcast %c1_i32 : i32 to vector<8x6xi32>
    %10 = arith.andi %8, %9 : vector<8x6xi32>
    %c0_i32 = arith.constant 0 : i32
    %11 = vector.broadcast %c0_i32 : i32 to vector<8x6xi32>
    %12 = arith.cmpi eq, %10, %11 : vector<8x6xi32>
    %13 = vector.shape_cast %6 : vector<8x1xf32> to vector<8x1xf32>
    %14 = vector.broadcast %13 : vector<8x1xf32> to vector<8x6xf32>
    %15 = vector.shape_cast %7 : vector<8x1xf32> to vector<8x1xf32>
    %16 = vector.broadcast %15 : vector<8x1xf32> to vector<8x6xf32>
    %17 = arith.select %12, %14, %16 : vector<8x6xi1>, vector<8x6xf32>
    %c2_i32 = arith.constant 2 : i32
    %18 = vector.broadcast %c2_i32 : i32 to vector<8x6xi32>
    %19 = arith.cmpi slt, %8, %18 : vector<8x6xi32>
    %c4_i32 = arith.constant 4 : i32
    %20 = vector.broadcast %c4_i32 : i32 to vector<8x6xi32>
    %21 = arith.cmpi slt, %8, %20 : vector<8x6xi32>
    %cst = arith.constant 0.157079637 : f32
    %cst_7 = arith.constant 0.0314159282 : f32
    %22 = vector.broadcast %cst : f32 to vector<8x6xf32>
    %23 = vector.broadcast %cst_7 : f32 to vector<8x6xf32>
    %24 = arith.select %21, %22, %23 : vector<8x6xi1>, vector<8x6xf32>
    %cst_8 = arith.constant 1.000000e-01 : f32
    %25 = vector.broadcast %cst_8 : f32 to vector<8x6xf32>
    %26 = arith.select %19, %25, %24 : vector<8x6xi1>, vector<8x6xf32>
    %27 = arith.mulf %17, %26 : vector<8x6xf32>
    %c2_i32_9 = arith.constant 2 : i32
    %28 = vector.broadcast %c2_i32_9 : i32 to vector<8x6xi32>
    %29 = arith.cmpi slt, %8, %28 : vector<8x6xi32>
    %30 = math.cos %27 : vector<8x6xf32>
    %cst_10 = arith.constant 5.000000e-01 : f32
    %31 = vector.broadcast %cst_10 : f32 to vector<8x6xf32>
    %32 = arith.mulf %31, %30 : vector<8x6xf32>
    %cst_11 = arith.constant 5.000000e-01 : f32
    %33 = vector.broadcast %cst_11 : f32 to vector<8x6xf32>
    %34 = arith.subf %33, %32 : vector<8x6xf32>
    %35 = arith.select %29, %27, %34 : vector<8x6xi1>, vector<8x6xf32>
    %cst_12 = arith.constant dense<0.000000e+00> : vector<8x20xf32>
    %36 = tpu.matmul %35, %0, %cst_12 {dimension_numbers = #tpu.dot_dimension_numbers<[1], [0], [0], [1], [0, 0, 1, 1], [], []>} : vector<8x6xf32>, vector<6x20xf32>, vector<8x20xf32> -> vector<8x20xf32>
    %37 = vector.broadcast %1 : vector<1x20xf32> to vector<8x20xf32>
    %38 = arith.addf %36, %37 : vector<8x20xf32>
    %39 = tpu.iota {dimensions = array<i32: 0>} : vector<8x20xi32>
    %40 = tpu.iota {dimensions = array<i32: 1>} : vector<8x20xi32>
    %c10_i32 = arith.constant 10 : i32
    %41 = vector.broadcast %c10_i32 : i32 to vector<8x20xi32>
    %42 = arith.cmpi slt, %40, %41 : vector<8x20xi32>
    %c0_13 = arith.constant 0 : index
    %c0_14 = arith.constant 0 : index
    %43 = vector.load %arg1[%c0_13, %c0_14] : memref<1x10xf32, #tpu.memory_space<vmem>>, vector<1x10xf32>
    %44 = vector.extract_strided_slice %38 {offsets = [0, 0], sizes = [1, 20], strides = [1, 1]} : vector<8x20xf32> to vector<1x20xf32>
    %cst_15 = arith.constant dense<0.000000e+00> : vector<1x20xf32>
    %45 = tpu.matmul %43, %2, %cst_15 {dimension_numbers = #tpu.dot_dimension_numbers<[1], [0], [0], [1], [0, 0, 1, 1], [], []>} : vector<1x10xf32>, vector<10x20xf32>, vector<1x20xf32> -> vector<1x20xf32>
    %46 = arith.addf %44, %45 : vector<1x20xf32>
    %47 = math.tanh %46 : vector<1x20xf32>
    %48 = vector.extract_strided_slice %47 {offsets = [0, 0], sizes = [1, 10], strides = [1, 1]} : vector<1x20xf32> to vector<1x10xf32>
    %c0_i32_16 = arith.constant 0 : i32
    %49 = vector.broadcast %c0_i32_16 : i32 to vector<8x20xi32>
    %50 = arith.cmpi eq, %39, %49 : vector<8x20xi32>
    %51 = arith.andi %50, %42 : vector<8x20xi1>
    %52 = vector.shape_cast %47 : vector<1x20xf32> to vector<1x20xf32>
    %53 = vector.broadcast %52 : vector<1x20xf32> to vector<8x20xf32>
    %54 = arith.select %51, %53, %38 : vector<8x20xi1>, vector<8x20xf32>
    %55 = vector.extract_strided_slice %38 {offsets = [1, 0], sizes = [1, 20], strides = [1, 1]} : vector<8x20xf32> to vector<1x20xf32>
    %cst_17 = arith.constant dense<0.000000e+00> : vector<1x20xf32>
    %56 = tpu.matmul %48, %2, %cst_17 {dimension_numbers = #tpu.dot_dimension_numbers<[1], [0], [0], [1], [0, 0, 1, 1], [], []>} : vector<1x10xf32>, vector<10x20xf32>, vector<1x20xf32> -> vector<1x20xf32>
    %57 = arith.addf %55, %56 : vector<1x20xf32>
    %58 = math.tanh %57 : vector<1x20xf32>
    %59 = vector.extract_strided_slice %58 {offsets = [0, 0], sizes = [1, 10], strides = [1, 1]} : vector<1x20xf32> to vector<1x10xf32>
    %c1_i32_18 = arith.constant 1 : i32
    %60 = vector.broadcast %c1_i32_18 : i32 to vector<8x20xi32>
    %61 = arith.cmpi eq, %39, %60 : vector<8x20xi32>
    %62 = arith.andi %61, %42 : vector<8x20xi1>
    %63 = vector.shape_cast %58 : vector<1x20xf32> to vector<1x20xf32>
    %64 = vector.broadcast %63 : vector<1x20xf32> to vector<8x20xf32>
    %65 = arith.select %62, %64, %54 : vector<8x20xi1>, vector<8x20xf32>
    %66 = vector.extract_strided_slice %38 {offsets = [2, 0], sizes = [1, 20], strides = [1, 1]} : vector<8x20xf32> to vector<1x20xf32>
    %cst_19 = arith.constant dense<0.000000e+00> : vector<1x20xf32>
    %67 = tpu.matmul %59, %2, %cst_19 {dimension_numbers = #tpu.dot_dimension_numbers<[1], [0], [0], [1], [0, 0, 1, 1], [], []>} : vector<1x10xf32>, vector<10x20xf32>, vector<1x20xf32> -> vector<1x20xf32>
    %68 = arith.addf %66, %67 : vector<1x20xf32>
    %69 = math.tanh %68 : vector<1x20xf32>
    %70 = vector.extract_strided_slice %69 {offsets = [0, 0], sizes = [1, 10], strides = [1, 1]} : vector<1x20xf32> to vector<1x10xf32>
    %c2_i32_20 = arith.constant 2 : i32
    %71 = vector.broadcast %c2_i32_20 : i32 to vector<8x20xi32>
    %72 = arith.cmpi eq, %39, %71 : vector<8x20xi32>
    %73 = arith.andi %72, %42 : vector<8x20xi1>
    %74 = vector.shape_cast %69 : vector<1x20xf32> to vector<1x20xf32>
    %75 = vector.broadcast %74 : vector<1x20xf32> to vector<8x20xf32>
    %76 = arith.select %73, %75, %65 : vector<8x20xi1>, vector<8x20xf32>
    %77 = vector.extract_strided_slice %38 {offsets = [3, 0], sizes = [1, 20], strides = [1, 1]} : vector<8x20xf32> to vector<1x20xf32>
    %cst_21 = arith.constant dense<0.000000e+00> : vector<1x20xf32>
    %78 = tpu.matmul %70, %2, %cst_21 {dimension_numbers = #tpu.dot_dimension_numbers<[1], [0], [0], [1], [0, 0, 1, 1], [], []>} : vector<1x10xf32>, vector<10x20xf32>, vector<1x20xf32> -> vector<1x20xf32>
    %79 = arith.addf %77, %78 : vector<1x20xf32>
    %80 = math.tanh %79 : vector<1x20xf32>
    %81 = vector.extract_strided_slice %80 {offsets = [0, 0], sizes = [1, 10], strides = [1, 1]} : vector<1x20xf32> to vector<1x10xf32>
    %c3_i32 = arith.constant 3 : i32
    %82 = vector.broadcast %c3_i32 : i32 to vector<8x20xi32>
    %83 = arith.cmpi eq, %39, %82 : vector<8x20xi32>
    %84 = arith.andi %83, %42 : vector<8x20xi1>
    %85 = vector.shape_cast %80 : vector<1x20xf32> to vector<1x20xf32>
    %86 = vector.broadcast %85 : vector<1x20xf32> to vector<8x20xf32>
    %87 = arith.select %84, %86, %76 : vector<8x20xi1>, vector<8x20xf32>
    %88 = vector.extract_strided_slice %38 {offsets = [4, 0], sizes = [1, 20], strides = [1, 1]} : vector<8x20xf32> to vector<1x20xf32>
    %cst_22 = arith.constant dense<0.000000e+00> : vector<1x20xf32>
    %89 = tpu.matmul %81, %2, %cst_22 {dimension_numbers = #tpu.dot_dimension_numbers<[1], [0], [0], [1], [0, 0, 1, 1], [], []>} : vector<1x10xf32>, vector<10x20xf32>, vector<1x20xf32> -> vector<1x20xf32>
    %90 = arith.addf %88, %89 : vector<1x20xf32>
    %91 = math.tanh %90 : vector<1x20xf32>
    %92 = vector.extract_strided_slice %91 {offsets = [0, 0], sizes = [1, 10], strides = [1, 1]} : vector<1x20xf32> to vector<1x10xf32>
    %c4_i32_23 = arith.constant 4 : i32
    %93 = vector.broadcast %c4_i32_23 : i32 to vector<8x20xi32>
    %94 = arith.cmpi eq, %39, %93 : vector<8x20xi32>
    %95 = arith.andi %94, %42 : vector<8x20xi1>
    %96 = vector.shape_cast %91 : vector<1x20xf32> to vector<1x20xf32>
    %97 = vector.broadcast %96 : vector<1x20xf32> to vector<8x20xf32>
    %98 = arith.select %95, %97, %87 : vector<8x20xi1>, vector<8x20xf32>
    %99 = vector.extract_strided_slice %38 {offsets = [5, 0], sizes = [1, 20], strides = [1, 1]} : vector<8x20xf32> to vector<1x20xf32>
    %cst_24 = arith.constant dense<0.000000e+00> : vector<1x20xf32>
    %100 = tpu.matmul %92, %2, %cst_24 {dimension_numbers = #tpu.dot_dimension_numbers<[1], [0], [0], [1], [0, 0, 1, 1], [], []>} : vector<1x10xf32>, vector<10x20xf32>, vector<1x20xf32> -> vector<1x20xf32>
    %101 = arith.addf %99, %100 : vector<1x20xf32>
    %102 = math.tanh %101 : vector<1x20xf32>
    %103 = vector.extract_strided_slice %102 {offsets = [0, 0], sizes = [1, 10], strides = [1, 1]} : vector<1x20xf32> to vector<1x10xf32>
    %c5_i32 = arith.constant 5 : i32
    %104 = vector.broadcast %c5_i32 : i32 to vector<8x20xi32>
    %105 = arith.cmpi eq, %39, %104 : vector<8x20xi32>
    %106 = arith.andi %105, %42 : vector<8x20xi1>
    %107 = vector.shape_cast %102 : vector<1x20xf32> to vector<1x20xf32>
    %108 = vector.broadcast %107 : vector<1x20xf32> to vector<8x20xf32>
    %109 = arith.select %106, %108, %98 : vector<8x20xi1>, vector<8x20xf32>
    %110 = vector.extract_strided_slice %38 {offsets = [6, 0], sizes = [1, 20], strides = [1, 1]} : vector<8x20xf32> to vector<1x20xf32>
    %cst_25 = arith.constant dense<0.000000e+00> : vector<1x20xf32>
    %111 = tpu.matmul %103, %2, %cst_25 {dimension_numbers = #tpu.dot_dimension_numbers<[1], [0], [0], [1], [0, 0, 1, 1], [], []>} : vector<1x10xf32>, vector<10x20xf32>, vector<1x20xf32> -> vector<1x20xf32>
    %112 = arith.addf %110, %111 : vector<1x20xf32>
    %113 = math.tanh %112 : vector<1x20xf32>
    %114 = vector.extract_strided_slice %113 {offsets = [0, 0], sizes = [1, 10], strides = [1, 1]} : vector<1x20xf32> to vector<1x10xf32>
    %c6_i32 = arith.constant 6 : i32
    %115 = vector.broadcast %c6_i32 : i32 to vector<8x20xi32>
    %116 = arith.cmpi eq, %39, %115 : vector<8x20xi32>
    %117 = arith.andi %116, %42 : vector<8x20xi1>
    %118 = vector.shape_cast %113 : vector<1x20xf32> to vector<1x20xf32>
    %119 = vector.broadcast %118 : vector<1x20xf32> to vector<8x20xf32>
    %120 = arith.select %117, %119, %109 : vector<8x20xi1>, vector<8x20xf32>
    %121 = vector.extract_strided_slice %38 {offsets = [7, 0], sizes = [1, 20], strides = [1, 1]} : vector<8x20xf32> to vector<1x20xf32>
    %cst_26 = arith.constant dense<0.000000e+00> : vector<1x20xf32>
    %122 = tpu.matmul %114, %2, %cst_26 {dimension_numbers = #tpu.dot_dimension_numbers<[1], [0], [0], [1], [0, 0, 1, 1], [], []>} : vector<1x10xf32>, vector<10x20xf32>, vector<1x20xf32> -> vector<1x20xf32>
    %123 = arith.addf %121, %122 : vector<1x20xf32>
    %124 = math.tanh %123 : vector<1x20xf32>
    %125 = vector.extract_strided_slice %124 {offsets = [0, 0], sizes = [1, 10], strides = [1, 1]} : vector<1x20xf32> to vector<1x10xf32>
    %c7_i32 = arith.constant 7 : i32
    %126 = vector.broadcast %c7_i32 : i32 to vector<8x20xi32>
    %127 = arith.cmpi eq, %39, %126 : vector<8x20xi32>
    %128 = arith.andi %127, %42 : vector<8x20xi1>
    %129 = vector.shape_cast %124 : vector<1x20xf32> to vector<1x20xf32>
    %130 = vector.broadcast %129 : vector<1x20xf32> to vector<8x20xf32>
    %131 = arith.select %128, %130, %120 : vector<8x20xi1>, vector<8x20xf32>
    %cst_27 = arith.constant 0.00999999977 : f32
    %132 = vector.broadcast %cst_27 : f32 to vector<8x20xf32>
    %133 = arith.mulf %132, %131 : vector<8x20xf32>
    %134 = arith.maximumf %131, %133 : vector<8x20xf32>
    %cst_28 = arith.constant dense<0.000000e+00> : vector<8x2xf32>
    %135 = tpu.matmul %134, %3, %cst_28 {dimension_numbers = #tpu.dot_dimension_numbers<[1], [0], [0], [1], [0, 0, 1, 1], [], []>} : vector<8x20xf32>, vector<20x2xf32>, vector<8x2xf32> -> vector<8x2xf32>
    %136 = vector.broadcast %4 : vector<1x2xf32> to vector<8x2xf32>
    %137 = arith.addf %135, %136 : vector<8x2xf32>
    %cst_29 = arith.constant 0.00999999977 : f32
    %138 = vector.broadcast %cst_29 : f32 to vector<8x2xf32>
    %139 = arith.mulf %138, %137 : vector<8x2xf32>
    %140 = arith.maximumf %137, %139 : vector<8x2xf32>
    %c0_30 = arith.constant 0 : index
    %c0_31 = arith.constant 0 : index
    %141 = vector.load %arg3[%c0_30, %c0_31] : memref<8x2xf32, #tpu.memory_space<vmem>>, vector<8x2xf32>
    tpu.vector_store %arg3[%c0_30, %c0_31], %140 {strides = array<i32>} : memref<8x2xf32, #tpu.memory_space<vmem>>, vector<8x2xf32>,
    %c0_32 = arith.constant 0 : index
    %c0_33 = arith.constant 0 : index
    %142 = vector.load %arg4[%c0_32, %c0_33] : memref<1x10xf32, #tpu.memory_space<vmem>>, vector<1x10xf32>
    tpu.vector_store %arg4[%c0_32, %c0_33], %125 {strides = array<i32>} : memref<1x10xf32, #tpu.memory_space<vmem>>, vector<1x10xf32>,
    return
  }
}

</mosaic_0001>

<llo_original>
// kernel: _forward.1
$region0: #{_forward.1}
  #allocation0 [shape = 'u32[]', space=smem, size = 0x4, offset = 0x4, fixed_abs, tag = 'smem constant byte address 0x4 - core index']
  #allocation1 [shape = 'u32[144,128]{1,0:T(1,128)}', space=vmem, size = 0x12000, scoped, tag = 'internal scratch']
  %s0 = inlined_call_operand.vmem [shape: f32[8,2], index: 0, kind: input, shape index: {}]
  %s1 = inlined_call_operand.vmem [shape: f32[1,10], index: 1, kind: input, shape index: {}]
  %s2 = inlined_call_operand.hbm [shape: f32[40,128], index: 2, kind: input, shape index: {}]
  %s3 = inlined_call_operand.vmem [shape: f32[8,2], index: 3, kind: output, shape index: {0}]
  %s4 = inlined_call_operand.hbm [shape: f32[1,10], index: 4, kind: output, shape index: {1}]
  %5 = xla_tuple %s3, %s4
  %s6 = sld [smem:[#allocation0]]
  $region34: #{_forward.1} parent=0
    _
  %s8 = ssub.s32 1, %s6
  %s9 = scalar_select 0, %s8, %s6
  $region1: #{_forward.1} parent=0
    #allocation2 [shape = 'u8[20480]{0}', space=vmem, size = 0x5000, scoped, tag = 'input window, operand 2, single buffered']
    #allocation3 [shape = 's32[1]{0}', space=sflag, size = 0x4, scoped, tag = 'scoped memory for _forward.1']
    #allocation4 [shape = 's32[1]{0}', space=sflag, size = 0x4, scoped, tag = 'scoped memory for _forward.1']
    #allocation5 [shape = 'u8[512]{0}', space=vmem, size = 0x400, scoped, tag = 'output window, operand 1, single buffered']
    %10 = vsyncpa [#allocation3], 0
    %11 = vsyncpa [#allocation4], 0
    // Predicated region
    $region2: #{_forward.1} parent=1 // pred_check
      _
    $region3: #{_forward.1} parent=1 // pred_check_branch
      %13 = sbr.rel (0) target = $region5
    $region4: #{_forward.1} parent=1 // pred_region
      _
    $region5: #{_forward.1} parent=1 // pred_fallthru
      _
    // Predicated region
    $region6: #{_forward.1} parent=1 // pred_check
      _
    $region7: #{_forward.1} parent=1 // pred_check_branch
      %15 = sbr.rel (0) target = $region9
    $region8: #{_forward.1} parent=1 // pred_region
      _
    $region9: #{_forward.1} parent=1 // pred_fallthru
      _
    // Predicated region
    $region10: #{_forward.1} parent=1 // pred_check
      _
    $region11: #{_forward.1} parent=1 // pred_check_branch
      %17 = sbr.rel (0) target = $region13
    $region12: #{_forward.1} parent=1 // pred_region
      %s19 = ssub.s32 640, 640
      %20 = vsyncadd [#allocation3], %s19
      %s21 = sshll.u32 [#allocation2], 4
      %s22 = int_to_ptr.vmem [resolvable:$true] %s21
      %27 = dma.hbm_to_vmem [thread:$0]  %s2, 640, %s22, [#allocation3], 128, 128, 8
    $region13: #{_forward.1} parent=1 // pred_fallthru
      _
    // Predicated region
    $region14: #{_forward.1} parent=1 // pred_check
      _
    $region15: #{_forward.1} parent=1 // pred_check_branch
      %29 = sbr.rel (0) target = $region17
    $region16: #{_forward.1} parent=1 // pred_region
      %30 = dma.done [#allocation3], 640
    $region17: #{_forward.1} parent=1 // pred_fallthru
      _
    %v31 = vld [vmem:[#allocation2] sm:$0x3f]
    %v32 = vld [vmem:[#allocation2 + $0x6] sm:$0x1]
    %v33 = vld [vmem:[#allocation2 + $0x8] sm:$0xff]
    %v34 = vld [vmem:[#allocation2 + $0x10] sm:$0x3]
    %v35 = vld [vmem:[#allocation2 + $0x12] sm:$0xff]
    %v36 = vld [vmem:[#allocation2 + $0x1a] sm:$0xff]
    %v37 = vld [vmem:[#allocation2 + $0x22] sm:$0xf]
    %v38 = vld [vmem:[#allocation2 + $0x26] sm:$0x1]
    %v39 = vld [vmem:[%s0] sm:$0xff]
    %v40 = vlaneseq
    %v41 = vand.u32 %v40, 127
    %v42 = vand.u32 %v41, 1
    %vm43 = vcmp.eq.s32.totalorder %v42, 0
    %45 = vset.pattern.permute.xlu0 0
    %46 = vperm.xlu0 %45, %v39
    %v47 = vpop.permute.xlu0 %46
    %49 = vset.pattern.permute.xlu0 1
    %50 = vperm.xlu0 %49, %v39
    %v51 = vpop.permute.xlu0 %50
    %v53 = vsel %vm43, %v47, %v51
    %vm54 = vcmp.lt.s32.totalorder %v41, 2
    %vm55 = vcmp.lt.s32.totalorder %v41, 4
    %v56 = vsel %vm55, 0.15707964, 0.03141593
    %v57 = vsel %vm54, 0.1, %v56
    %v58 = vmul.f32 %v53, %v57
    %v59 = vand.u32 2147483647, %v58
    %vm60 = vcmp.le.f32.partialorder %v59, 0.7853982
    %vm61 = vcmp.lt.s32.totalorder %v58, 0
    %v62 = vand.u32 %v58, 2139095040
    %v63 = vshrl.u32 %v62, 23
    %v64 = vsub.s32 %v63, 127
    %v65 = vand.u32 2147483647, %v58
    %v66 = vand.u32 %v65, 8388607
    %v67 = vor.u32 %v66, 8388608
    %v68 = vsub.s32 0, %v67
    %v69 = vadd.s32 %v64, 1
    %vm70 = vcmp.gt.s32.totalorder %v69, 0
    %v71 = vsel %vm70, %v69, 0
    %v72 = vshrl.u32 %v71, 5
    %v73 = vand.u32 %v71, 31
    %v74 = vsub.s32 32, %v73
    %v75 = vshrl.u32 683565275, %v74
    %v76 = vshll.u32 683565275, %v73
    %v77 = vshrl.u32 2475754826, %v74
    %v78 = vor.u32 %v76, %v77
    %v79 = vshll.u32 2475754826, %v73
    %v80 = vshrl.u32 2131351028, %v74
    %v81 = vor.u32 %v79, %v80
    %v82 = vshll.u32 2131351028, %v73
    %v83 = vshrl.u32 2102212464, %v74
    %v84 = vor.u32 %v82, %v83
    %v85 = vshll.u32 2102212464, %v73
    %v86 = vshrl.u32 920167782, %v74
    %v87 = vor.u32 %v85, %v86
    %v88 = vshll.u32 920167782, %v73
    %v89 = vshrl.u32 1326507024, %v74
    %v90 = vor.u32 %v88, %v89
    %vm91 = vcmp.lt.s32.totalorder %v72, 1
    %vm92 = vcmp.lt.s32.totalorder %v72, 2
    %vm93 = vcmp.lt.s32.totalorder %v72, 3
    %vm94 = vcmp.lt.s32.totalorder %v72, 4
    %v95 = vsel %vm91, %v75, %v78
    %v96 = vsel %vm94, %v84, 2102212464
    %v97 = vsel %vm93, %v81, %v96
    %v98 = vsel %vm92, %v95, %v97
    %v99 = vsel %vm91, %v78, %v81
    %v100 = vsel %vm94, %v87, 920167782
    %v101 = vsel %vm93, %v84, %v100
    %v102 = vsel %vm92, %v99, %v101
    %v103 = vsel %vm91, %v81, %v84
    %v104 = vsel %vm94, %v90, 1326507024
    %v105 = vsel %vm93, %v87, %v104
    %v106 = vsel %vm92, %v103, %v105
    %v107 = vshll.u32 %v67, 8
    %v108 = vmul.u32.u64.compose %v107, %v106
    %v109 = vextract.low.u32 %v108
    %v110 = vextract.high.u32 %v108
    %v111 = vmul.u32.u64.compose %v107, %v102
    %v112 = vextract.low.u32 %v111
    %v113 = vextract.high.u32 %v111
    %v114 = vmul.u32 %v107, %v98
    %v115 = vadd.s32 %v110, %v112
    %vm116 = vc.u32 %v110, %v112
    %v117 = vadd.s32 %v113, 1
    %v118 = vsel %vm116, %v117, %v113
    %v119 = vadd.s32 %v114, %v118
    %v120 = vadd.s32 %v119, 536870912
    %v121 = vshrl.u32 %v120, 30
    %v122 = vshll.u32 %v121, 30
    %v123 = vsub.s32 %v119, %v122
    %vm124 = vcmp.lt.s32.totalorder %v123, 0
    %v125 = vsub.s32 0, %v123
    %v126 = vsel %vm124, %v125, %v123
    %v127 = vclz %v126
    %v128 = vsub.s32 %v127, 2
    %vm129 = vcmp.gt.s32.totalorder 0, %v128
    %v130 = vsel %vm129, 0, %v128
    %v131 = vsub.s32 32, %v130
    %v132 = vshll.u32 %v123, %v130
    %v133 = vshrl.u32 %v115, %v131
    %v134 = vor.u32 %v132, %v133
    %v135 = vsub.s32 4294967266, %v130
    %v136 = vadd.s32 %v135, 127
    %v137 = vshll.u32 %v136, 23
    %v138 = vor.u32 4788187, %v137
    %v139 = vand.u32 2147483647, %v138
    %v141 = vcvt.s32.f32 %v134
    %v142 = vmul.f32 %v141, %v139
    %v143 = vxor.u32 %v142, 2147483648
    %v144 = vsel %vm61, %v143, %v142
    %v145 = vsub.s32 4, %v121
    %v146 = vsel %vm61, %v145, %v121
    %v147 = vsel %vm60, %v58, %v144
    %v148 = vsel %vm60, 0, %v146
    %v149 = vcosq.f32.pop %v147
    %v150 = vsinq.f32.pop %v147
    %vm151 = vweird.f32 %v58
    %v152 = vand.u32 %v148, 3
    %vm153 = vcmp.lt.s32.totalorder %v152, 2
    %vm154 = vcmp.eq.s32.totalorder %v152, 0
    %v155 = vxor.u32 %v150, 2147483648
    %v156 = vsel %vm154, %v149, %v155
    %vm157 = vcmp.eq.s32.totalorder %v152, 2
    %v158 = vxor.u32 %v149, 2147483648
    %v159 = vsel %vm157, %v158, %v150
    %v160 = vsel %vm153, %v156, %v159
    %v161 = vsel %vm151, nan, %v160
    %v162 = vmul.f32 %v161, 0.5
    %v163 = vsub.f32 0.5, %v162
    %v164 = vsel %vm54, %v58, %v163
    %v165 = vlaneseq
    %v166 = vshrl.u32 %v165, 7
    %v167 = vsub.s32 0, %v166
    %v168 = vrot.slane %v32, %v167
    %vm169 = vcmask 48128
    %v171 = vsel %vm169, %v164, 0
    %vm173 = vcmask 1045504
    %v175 = vsel %vm173, %v31, 0
    %177 = vmatprep.subr.mxu0 0.0
    %178 = vmatpush1.msra.mxu0 %v175
    %179 = vmatprep.subr.mxu0 0.0
    %180 = vmatpush1.msra.mxu0 0.0
    %181 = vmatprep.subr.mxu0 0.0
    %182 = vmatpush1.msra.mxu0 0.0
    %183 = vmatprep.subr.mxu0 0.0
    %184 = vmatpush1.msra.mxu0 0.0
    %185 = vmatprep.subr.mxu0 0.0
    %186 = vmatpush1.msra.mxu0 0.0
    %187 = vmatprep.subr.mxu0 0.0
    %188 = vmatpush1.msra.mxu0 0.0
    %189 = vmatprep.subr.mxu0 0.0
    %190 = vmatpush1.msra.mxu0 0.0
    %191 = vmatprep.subr.mxu0 0.0
    %192 = vmatpush1.msra.mxu0 0.0
    %193 = vmatprep.subr.mxu0 0.0
    %194 = vmatpush1.msra.mxu0 0.0
    %195 = vmatprep.subr.mxu0 0.0
    %196 = vmatpush1.msra.mxu0 0.0
    %197 = vmatprep.subr.mxu0 0.0
    %198 = vmatpush1.msra.mxu0 0.0
    %199 = vmatprep.subr.mxu0 0.0
    %200 = vmatpush1.msra.mxu0 0.0
    %201 = vmatprep.subr.mxu0 0.0
    %202 = vmatpush1.msra.mxu0 0.0
    %203 = vmatprep.subr.mxu0 0.0
    %204 = vmatpush1.msra.mxu0 0.0
    %205 = vmatprep.subr.mxu0 0.0
    %206 = vmatpush1.msra.mxu0 0.0
    %207 = vmatprep.subr.mxu0 0.0
    %208 = vmatpush1.msra.mxu0 0.0
    %209 = vmatprep.subr.mxu0 0.0
    %210 = vmatpush1.msra.mxu0 0.0
    %211 = vmatprep.subr.mxu0 0.0
    %212 = vmatpush1.msra.mxu0 0.0
    %213 = vmatprep.subr.mxu0 0.0
    %214 = vmatpush1.msra.mxu0 0.0
    %215 = vmatprep.subr.mxu0 0.0
    %216 = vmatpush1.msra.mxu0 0.0
    %217 = vmatprep.subr.mxu0 0.0
    %218 = vmatpush1.msra.mxu0 0.0
    %219 = vmatprep.subr.mxu0 0.0
    %220 = vmatpush1.msra.mxu0 0.0
    %221 = vmatprep.subr.mxu0 0.0
    %222 = vmatpush1.msra.mxu0 0.0
    %223 = vmatprep.subr.mxu0 0.0
    %224 = vmatpush1.msra.mxu0 0.0
    %225 = vmatprep.subr.mxu0 0.0
    %226 = vmatpush1.msra.mxu0 0.0
    %227 = vmatprep.subr.mxu0 0.0
    %228 = vmatpush1.msra.mxu0 0.0
    %229 = vmatprep.subr.mxu0 0.0
    %230 = vmatpush1.msra.mxu0 0.0
    %231 = vmatprep.subr.mxu0 0.0
    %232 = vmatpush1.msra.mxu0 0.0
    %233 = vmatprep.subr.mxu0 0.0
    %234 = vmatpush1.msra.mxu0 0.0
    %235 = vmatprep.subr.mxu0 0.0
    %236 = vmatpush1.msra.mxu0 0.0
    %237 = vmatprep.subr.mxu0 0.0
    %238 = vmatpush1.msra.mxu0 0.0
    %239 = vmatprep.subr.mxu0 0.0
    %240 = vmatpush1.msra.mxu0 0.0
    %241 = vmatprep.mubr.f32.mxu0 0.0
    %242 = vmatmul.mubr.f32.gmra.mrb[0].mxu0 %v171
    %v243 = vpop.f32.mrb[0].mxu0
    %v244 = vadd.f32 %v168, %v243
    %v245 = vpop.f32.mrb[0].mxu0
    %246 = vdwg.mxu0
    %v247 = vlaneseq
    %v248 = vshrl.u32 %v247, 7
    %vm249 = vcmp.lt.s32.totalorder %v41, 10
    %v250 = vld [vmem:[%s1] sm:$0x1]
    %vm251 = vcmask 80896
    %v253 = vsel %vm251, %v250, 0
    %vm255 = vcmask 1041408
    %v257 = vsel %vm255, %v34, 0
    %259 = vmatprep.subr.mxu0 0.0
    %260 = vmatpush1.msra.mxu0 %v33
    %261 = vmatprep.subr.mxu0 0.0
    %262 = vmatpush1.msra.mxu0 %v257
    %263 = vmatprep.subr.mxu0 0.0
    %264 = vmatpush1.msra.mxu0 0.0
    %265 = vmatprep.subr.mxu0 0.0
    %266 = vmatpush1.msra.mxu0 0.0
    %267 = vmatprep.subr.mxu0 0.0
    %268 = vmatpush1.msra.mxu0 0.0
    %269 = vmatprep.subr.mxu0 0.0
    %270 = vmatpush1.msra.mxu0 0.0
    %271 = vmatprep.subr.mxu0 0.0
    %272 = vmatpush1.msra.mxu0 0.0
    %273 = vmatprep.subr.mxu0 0.0
    %274 = vmatpush1.msra.mxu0 0.0
    %275 = vmatprep.subr.mxu0 0.0
    %276 = vmatpush1.msra.mxu0 0.0
    %277 = vmatprep.subr.mxu0 0.0
    %278 = vmatpush1.msra.mxu0 0.0
    %279 = vmatprep.subr.mxu0 0.0
    %280 = vmatpush1.msra.mxu0 0.0
    %281 = vmatprep.subr.mxu0 0.0
    %282 = vmatpush1.msra.mxu0 0.0
    %283 = vmatprep.subr.mxu0 0.0
    %284 = vmatpush1.msra.mxu0 0.0
    %285 = vmatprep.subr.mxu0 0.0
    %286 = vmatpush1.msra.mxu0 0.0
    %287 = vmatprep.subr.mxu0 0.0
    %288 = vmatpush1.msra.mxu0 0.0
    %289 = vmatprep.subr.mxu0 0.0
    %290 = vmatpush1.msra.mxu0 0.0
    %291 = vmatprep.subr.mxu0 0.0
    %292 = vmatpush1.msra.mxu0 0.0
    %293 = vmatprep.subr.mxu0 0.0
    %294 = vmatpush1.msra.mxu0 0.0
    %295 = vmatprep.subr.mxu0 0.0
    %296 = vmatpush1.msra.mxu0 0.0
    %297 = vmatprep.subr.mxu0 0.0
    %298 = vmatpush1.msra.mxu0 0.0
    %299 = vmatprep.subr.mxu0 0.0
    %300 = vmatpush1.msra.mxu0 0.0
    %301 = vmatprep.subr.mxu0 0.0
    %302 = vmatpush1.msra.mxu0 0.0
    %303 = vmatprep.subr.mxu0 0.0
    %304 = vmatpush1.msra.mxu0 0.0
    %305 = vmatprep.subr.mxu0 0.0
    %306 = vmatpush1.msra.mxu0 0.0
    %307 = vmatprep.subr.mxu0 0.0
    %308 = vmatpush1.msra.mxu0 0.0
    %309 = vmatprep.subr.mxu0 0.0
    %310 = vmatpush1.msra.mxu0 0.0
    %311 = vmatprep.subr.mxu0 0.0
    %312 = vmatpush1.msra.mxu0 0.0
    %313 = vmatprep.subr.mxu0 0.0
    %314 = vmatpush1.msra.mxu0 0.0
    %315 = vmatprep.subr.mxu0 0.0
    %316 = vmatpush1.msra.mxu0 0.0
    %317 = vmatprep.subr.mxu0 0.0
    %318 = vmatpush1.msra.mxu0 0.0
    %319 = vmatprep.subr.mxu0 0.0
    %320 = vmatpush1.msra.mxu0 0.0
    %321 = vmatprep.subr.mxu0 0.0
    %322 = vmatpush1.msra.mxu0 0.0
    %323 = vmatprep.mubr.f32.mxu0 0.0
    %324 = vmatmul.mubr.f32.gmra.mrb[0].mxu0 %v253
    %v325 = vpop.f32.mrb[0].mxu0
    %v326 = vadd.f32 0.0, %v325
    %v327 = vpop.f32.mrb[0].mxu0
    %328 = vdwg.mxu0
    %v329 = vadd.f32 %v244, %v326
    %v330 = vtanh.pop %v329
    %vm331 = vcmp.eq.s32.totalorder %v248, 0
    %vm332 = vmand %vm331, %vm249
    %v333 = vlaneseq
    %v334 = vshrl.u32 %v333, 7
    %v335 = vsub.s32 0, %v334
    %v336 = vrot.slane %v330, %v335
    %v337 = vsel %vm332, %v336, %v244
    %v339 = vsel %vm251, %v330, 0
    %341 = vmatprep.subr.mxu0 0.0
    %342 = vmatpush1.msra.mxu0 %v33
    %343 = vmatprep.subr.mxu0 0.0
    %344 = vmatpush1.msra.mxu0 %v257
    %345 = vmatprep.subr.mxu0 0.0
    %346 = vmatpush1.msra.mxu0 0.0
    %347 = vmatprep.subr.mxu0 0.0
    %348 = vmatpush1.msra.mxu0 0.0
    %349 = vmatprep.subr.mxu0 0.0
    %350 = vmatpush1.msra.mxu0 0.0
    %351 = vmatprep.subr.mxu0 0.0
    %352 = vmatpush1.msra.mxu0 0.0
    %353 = vmatprep.subr.mxu0 0.0
    %354 = vmatpush1.msra.mxu0 0.0
    %355 = vmatprep.subr.mxu0 0.0
    %356 = vmatpush1.msra.mxu0 0.0
    %357 = vmatprep.subr.mxu0 0.0
    %358 = vmatpush1.msra.mxu0 0.0
    %359 = vmatprep.subr.mxu0 0.0
    %360 = vmatpush1.msra.mxu0 0.0
    %361 = vmatprep.subr.mxu0 0.0
    %362 = vmatpush1.msra.mxu0 0.0
    %363 = vmatprep.subr.mxu0 0.0
    %364 = vmatpush1.msra.mxu0 0.0
    %365 = vmatprep.subr.mxu0 0.0
    %366 = vmatpush1.msra.mxu0 0.0
    %367 = vmatprep.subr.mxu0 0.0
    %368 = vmatpush1.msra.mxu0 0.0
    %369 = vmatprep.subr.mxu0 0.0
    %370 = vmatpush1.msra.mxu0 0.0
    %371 = vmatprep.subr.mxu0 0.0
    %372 = vmatpush1.msra.mxu0 0.0
    %373 = vmatprep.subr.mxu0 0.0
    %374 = vmatpush1.msra.mxu0 0.0
    %375 = vmatprep.subr.mxu0 0.0
    %376 = vmatpush1.msra.mxu0 0.0
    %377 = vmatprep.subr.mxu0 0.0
    %378 = vmatpush1.msra.mxu0 0.0
    %379 = vmatprep.subr.mxu0 0.0
    %380 = vmatpush1.msra.mxu0 0.0
    %381 = vmatprep.subr.mxu0 0.0
    %382 = vmatpush1.msra.mxu0 0.0
    %383 = vmatprep.subr.mxu0 0.0
    %384 = vmatpush1.msra.mxu0 0.0
    %385 = vmatprep.subr.mxu0 0.0
    %386 = vmatpush1.msra.mxu0 0.0
    %387 = vmatprep.subr.mxu0 0.0
    %388 = vmatpush1.msra.mxu0 0.0
    %389 = vmatprep.subr.mxu0 0.0
    %390 = vmatpush1.msra.mxu0 0.0
    %391 = vmatprep.subr.mxu0 0.0
    %392 = vmatpush1.msra.mxu0 0.0
    %393 = vmatprep.subr.mxu0 0.0
    %394 = vmatpush1.msra.mxu0 0.0
    %395 = vmatprep.subr.mxu0 0.0
    %396 = vmatpush1.msra.mxu0 0.0
    %397 = vmatprep.subr.mxu0 0.0
    %398 = vmatpush1.msra.mxu0 0.0
    %399 = vmatprep.subr.mxu0 0.0
    %400 = vmatpush1.msra.mxu0 0.0
    %401 = vmatprep.subr.mxu0 0.0
    %402 = vmatpush1.msra.mxu0 0.0
    %403 = vmatprep.subr.mxu0 0.0
    %404 = vmatpush1.msra.mxu0 0.0
    %405 = vmatprep.mubr.f32.mxu0 0.0
    %406 = vmatmul.mubr.f32.gmra.mrb[0].mxu0 %v339
    %v407 = vpop.f32.mrb[0].mxu0
    %v408 = vadd.f32 0.0, %v407
    %v409 = vpop.f32.mrb[0].mxu0
    %410 = vdwg.mxu0
    %v412 = vrot.slane %v408, 7
    %v414 = vadd.f32 %v244, %v412
    %v415 = vtanh.pop %v414
    %vm416 = vcmp.eq.s32.totalorder %v248, 1
    %vm417 = vmand %vm416, %vm249
    %v418 = vlaneseq
    %v419 = vshrl.u32 %v418, 7
    %v420 = vsub.s32 1, %v419
    %v421 = vrot.slane %v415, %v420
    %v422 = vsel %vm417, %v421, %v337
    %v424 = vrot.slane %v415, 1
    %v425 = vsel %vm251, %v424, 0
    %427 = vmatprep.subr.mxu0 0.0
    %428 = vmatpush1.msra.mxu0 %v33
    %429 = vmatprep.subr.mxu0 0.0
    %430 = vmatpush1.msra.mxu0 %v257
    %431 = vmatprep.subr.mxu0 0.0
    %432 = vmatpush1.msra.mxu0 0.0
    %433 = vmatprep.subr.mxu0 0.0
    %434 = vmatpush1.msra.mxu0 0.0
    %435 = vmatprep.subr.mxu0 0.0
    %436 = vmatpush1.msra.mxu0 0.0
    %437 = vmatprep.subr.mxu0 0.0
    %438 = vmatpush1.msra.mxu0 0.0
    %439 = vmatprep.subr.mxu0 0.0
    %440 = vmatpush1.msra.mxu0 0.0
    %441 = vmatprep.subr.mxu0 0.0
    %442 = vmatpush1.msra.mxu0 0.0
    %443 = vmatprep.subr.mxu0 0.0
    %444 = vmatpush1.msra.mxu0 0.0
    %445 = vmatprep.subr.mxu0 0.0
    %446 = vmatpush1.msra.mxu0 0.0
    %447 = vmatprep.subr.mxu0 0.0
    %448 = vmatpush1.msra.mxu0 0.0
    %449 = vmatprep.subr.mxu0 0.0
    %450 = vmatpush1.msra.mxu0 0.0
    %451 = vmatprep.subr.mxu0 0.0
    %452 = vmatpush1.msra.mxu0 0.0
    %453 = vmatprep.subr.mxu0 0.0
    %454 = vmatpush1.msra.mxu0 0.0
    %455 = vmatprep.subr.mxu0 0.0
    %456 = vmatpush1.msra.mxu0 0.0
    %457 = vmatprep.subr.mxu0 0.0
    %458 = vmatpush1.msra.mxu0 0.0
    %459 = vmatprep.subr.mxu0 0.0
    %460 = vmatpush1.msra.mxu0 0.0
    %461 = vmatprep.subr.mxu0 0.0
    %462 = vmatpush1.msra.mxu0 0.0
    %463 = vmatprep.subr.mxu0 0.0
    %464 = vmatpush1.msra.mxu0 0.0
    %465 = vmatprep.subr.mxu0 0.0
    %466 = vmatpush1.msra.mxu0 0.0
    %467 = vmatprep.subr.mxu0 0.0
    %468 = vmatpush1.msra.mxu0 0.0
    %469 = vmatprep.subr.mxu0 0.0
    %470 = vmatpush1.msra.mxu0 0.0
    %471 = vmatprep.subr.mxu0 0.0
    %472 = vmatpush1.msra.mxu0 0.0
    %473 = vmatprep.subr.mxu0 0.0
    %474 = vmatpush1.msra.mxu0 0.0
    %475 = vmatprep.subr.mxu0 0.0
    %476 = vmatpush1.msra.mxu0 0.0
    %477 = vmatprep.subr.mxu0 0.0
    %478 = vmatpush1.msra.mxu0 0.0
    %479 = vmatprep.subr.mxu0 0.0
    %480 = vmatpush1.msra.mxu0 0.0
    %481 = vmatprep.subr.mxu0 0.0
    %482 = vmatpush1.msra.mxu0 0.0
    %483 = vmatprep.subr.mxu0 0.0
    %484 = vmatpush1.msra.mxu0 0.0
    %485 = vmatprep.subr.mxu0 0.0
    %486 = vmatpush1.msra.mxu0 0.0
    %487 = vmatprep.subr.mxu0 0.0
    %488 = vmatpush1.msra.mxu0 0.0
    %489 = vmatprep.subr.mxu0 0.0
    %490 = vmatpush1.msra.mxu0 0.0
    %491 = vmatprep.mubr.f32.mxu0 0.0
    %492 = vmatmul.mubr.f32.gmra.mrb[0].mxu0 %v425
    %v493 = vpop.f32.mrb[0].mxu0
    %v494 = vadd.f32 0.0, %v493
    %v495 = vpop.f32.mrb[0].mxu0
    %496 = vdwg.mxu0
    %v498 = vrot.slane %v494, 6
    %v500 = vadd.f32 %v244, %v498
    %v501 = vtanh.pop %v500
    %vm502 = vcmp.eq.s32.totalorder %v248, 2
    %vm503 = vmand %vm502, %vm249
    %v504 = vlaneseq
    %v505 = vshrl.u32 %v504, 7
    %v506 = vsub.s32 2, %v505
    %v507 = vrot.slane %v501, %v506
    %v508 = vsel %vm503, %v507, %v422
    %v510 = vrot.slane %v501, 2
    %v511 = vsel %vm251, %v510, 0
    %513 = vmatprep.subr.mxu0 0.0
    %514 = vmatpush1.msra.mxu0 %v33
    %515 = vmatprep.subr.mxu0 0.0
    %516 = vmatpush1.msra.mxu0 %v257
    %517 = vmatprep.subr.mxu0 0.0
    %518 = vmatpush1.msra.mxu0 0.0
    %519 = vmatprep.subr.mxu0 0.0
    %520 = vmatpush1.msra.mxu0 0.0
    %521 = vmatprep.subr.mxu0 0.0
    %522 = vmatpush1.msra.mxu0 0.0
    %523 = vmatprep.subr.mxu0 0.0
    %524 = vmatpush1.msra.mxu0 0.0
    %525 = vmatprep.subr.mxu0 0.0
    %526 = vmatpush1.msra.mxu0 0.0
    %527 = vmatprep.subr.mxu0 0.0
    %528 = vmatpush1.msra.mxu0 0.0
    %529 = vmatprep.subr.mxu0 0.0
    %530 = vmatpush1.msra.mxu0 0.0
    %531 = vmatprep.subr.mxu0 0.0
    %532 = vmatpush1.msra.mxu0 0.0
    %533 = vmatprep.subr.mxu0 0.0
    %534 = vmatpush1.msra.mxu0 0.0
    %535 = vmatprep.subr.mxu0 0.0
    %536 = vmatpush1.msra.mxu0 0.0
    %537 = vmatprep.subr.mxu0 0.0
    %538 = vmatpush1.msra.mxu0 0.0
    %539 = vmatprep.subr.mxu0 0.0
    %540 = vmatpush1.msra.mxu0 0.0
    %541 = vmatprep.subr.mxu0 0.0
    %542 = vmatpush1.msra.mxu0 0.0
    %543 = vmatprep.subr.mxu0 0.0
    %544 = vmatpush1.msra.mxu0 0.0
    %545 = vmatprep.subr.mxu0 0.0
    %546 = vmatpush1.msra.mxu0 0.0
    %547 = vmatprep.subr.mxu0 0.0
    %548 = vmatpush1.msra.mxu0 0.0
    %549 = vmatprep.subr.mxu0 0.0
    %550 = vmatpush1.msra.mxu0 0.0
    %551 = vmatprep.subr.mxu0 0.0
    %552 = vmatpush1.msra.mxu0 0.0
    %553 = vmatprep.subr.mxu0 0.0
    %554 = vmatpush1.msra.mxu0 0.0
    %555 = vmatprep.subr.mxu0 0.0
    %556 = vmatpush1.msra.mxu0 0.0
    %557 = vmatprep.subr.mxu0 0.0
    %558 = vmatpush1.msra.mxu0 0.0
    %559 = vmatprep.subr.mxu0 0.0
    %560 = vmatpush1.msra.mxu0 0.0
    %561 = vmatprep.subr.mxu0 0.0
    %562 = vmatpush1.msra.mxu0 0.0
    %563 = vmatprep.subr.mxu0 0.0
    %564 = vmatpush1.msra.mxu0 0.0
    %565 = vmatprep.subr.mxu0 0.0
    %566 = vmatpush1.msra.mxu0 0.0
    %567 = vmatprep.subr.mxu0 0.0
    %568 = vmatpush1.msra.mxu0 0.0
    %569 = vmatprep.subr.mxu0 0.0
    %570 = vmatpush1.msra.mxu0 0.0
    %571 = vmatprep.subr.mxu0 0.0
    %572 = vmatpush1.msra.mxu0 0.0
    %573 = vmatprep.subr.mxu0 0.0
    %574 = vmatpush1.msra.mxu0 0.0
    %575 = vmatprep.subr.mxu0 0.0
    %576 = vmatpush1.msra.mxu0 0.0
    %577 = vmatprep.mubr.f32.mxu0 0.0
    %578 = vmatmul.mubr.f32.gmra.mrb[0].mxu0 %v511
    %v579 = vpop.f32.mrb[0].mxu0
    %v580 = vadd.f32 0.0, %v579
    %v581 = vpop.f32.mrb[0].mxu0
    %582 = vdwg.mxu0
    %v584 = vrot.slane %v580, 5
    %v586 = vadd.f32 %v244, %v584
    %v587 = vtanh.pop %v586
    %vm588 = vcmp.eq.s32.totalorder %v248, 3
    %vm589 = vmand %vm588, %vm249
    %v590 = vlaneseq
    %v591 = vshrl.u32 %v590, 7
    %v592 = vsub.s32 3, %v591
    %v593 = vrot.slane %v587, %v592
    %v594 = vsel %vm589, %v593, %v508
    %v596 = vrot.slane %v587, 3
    %v597 = vsel %vm251, %v596, 0
    %599 = vmatprep.subr.mxu0 0.0
    %600 = vmatpush1.msra.mxu0 %v33
    %601 = vmatprep.subr.mxu0 0.0
    %602 = vmatpush1.msra.mxu0 %v257
    %603 = vmatprep.subr.mxu0 0.0
    %604 = vmatpush1.msra.mxu0 0.0
    %605 = vmatprep.subr.mxu0 0.0
    %606 = vmatpush1.msra.mxu0 0.0
    %607 = vmatprep.subr.mxu0 0.0
    %608 = vmatpush1.msra.mxu0 0.0
    %609 = vmatprep.subr.mxu0 0.0
    %610 = vmatpush1.msra.mxu0 0.0
    %611 = vmatprep.subr.mxu0 0.0
    %612 = vmatpush1.msra.mxu0 0.0
    %613 = vmatprep.subr.mxu0 0.0
    %614 = vmatpush1.msra.mxu0 0.0
    %615 = vmatprep.subr.mxu0 0.0
    %616 = vmatpush1.msra.mxu0 0.0
    %617 = vmatprep.subr.mxu0 0.0
    %618 = vmatpush1.msra.mxu0 0.0
    %619 = vmatprep.subr.mxu0 0.0
    %620 = vmatpush1.msra.mxu0 0.0
    %621 = vmatprep.subr.mxu0 0.0
    %622 = vmatpush1.msra.mxu0 0.0
    %623 = vmatprep.subr.mxu0 0.0
    %624 = vmatpush1.msra.mxu0 0.0
    %625 = vmatprep.subr.mxu0 0.0
    %626 = vmatpush1.msra.mxu0 0.0
    %627 = vmatprep.subr.mxu0 0.0
    %628 = vmatpush1.msra.mxu0 0.0
    %629 = vmatprep.subr.mxu0 0.0
    %630 = vmatpush1.msra.mxu0 0.0
    %631 = vmatprep.subr.mxu0 0.0
    %632 = vmatpush1.msra.mxu0 0.0
    %633 = vmatprep.subr.mxu0 0.0
    %634 = vmatpush1.msra.mxu0 0.0
    %635 = vmatprep.subr.mxu0 0.0
    %636 = vmatpush1.msra.mxu0 0.0
    %637 = vmatprep.subr.mxu0 0.0
    %638 = vmatpush1.msra.mxu0 0.0
    %639 = vmatprep.subr.mxu0 0.0
    %640 = vmatpush1.msra.mxu0 0.0
    %641 = vmatprep.subr.mxu0 0.0
    %642 = vmatpush1.msra.mxu0 0.0
    %643 = vmatprep.subr.mxu0 0.0
    %644 = vmatpush1.msra.mxu0 0.0
    %645 = vmatprep.subr.mxu0 0.0
    %646 = vmatpush1.msra.mxu0 0.0
    %647 = vmatprep.subr.mxu0 0.0
    %648 = vmatpush1.msra.mxu0 0.0
    %649 = vmatprep.subr.mxu0 0.0
    %650 = vmatpush1.msra.mxu0 0.0
    %651 = vmatprep.subr.mxu0 0.0
    %652 = vmatpush1.msra.mxu0 0.0
    %653 = vmatprep.subr.mxu0 0.0
    %654 = vmatpush1.msra.mxu0 0.0
    %655 = vmatprep.subr.mxu0 0.0
    %656 = vmatpush1.msra.mxu0 0.0
    %657 = vmatprep.subr.mxu0 0.0
    %658 = vmatpush1.msra.mxu0 0.0
    %659 = vmatprep.subr.mxu0 0.0
    %660 = vmatpush1.msra.mxu0 0.0
    %661 = vmatprep.subr.mxu0 0.0
    %662 = vmatpush1.msra.mxu0 0.0
    %663 = vmatprep.mubr.f32.mxu0 0.0
    %664 = vmatmul.mubr.f32.gmra.mrb[0].mxu0 %v597
    %v665 = vpop.f32.mrb[0].mxu0
    %v666 = vadd.f32 0.0, %v665
    %v667 = vpop.f32.mrb[0].mxu0
    %668 = vdwg.mxu0
    %v670 = vrot.slane %v666, 4
    %v672 = vadd.f32 %v244, %v670
    %v673 = vtanh.pop %v672
    %vm674 = vcmp.eq.s32.totalorder %v248, 4
    %vm675 = vmand %vm674, %vm249
    %v676 = vlaneseq
    %v677 = vshrl.u32 %v676, 7
    %v678 = vsub.s32 4, %v677
    %v679 = vrot.slane %v673, %v678
    %v680 = vsel %vm675, %v679, %v594
    %v682 = vrot.slane %v673, 4
    %v683 = vsel %vm251, %v682, 0
    %685 = vmatprep.subr.mxu0 0.0
    %686 = vmatpush1.msra.mxu0 %v33
    %687 = vmatprep.subr.mxu0 0.0
    %688 = vmatpush1.msra.mxu0 %v257
    %689 = vmatprep.subr.mxu0 0.0
    %690 = vmatpush1.msra.mxu0 0.0
    %691 = vmatprep.subr.mxu0 0.0
    %692 = vmatpush1.msra.mxu0 0.0
    %693 = vmatprep.subr.mxu0 0.0
    %694 = vmatpush1.msra.mxu0 0.0
    %695 = vmatprep.subr.mxu0 0.0
    %696 = vmatpush1.msra.mxu0 0.0
    %697 = vmatprep.subr.mxu0 0.0
    %698 = vmatpush1.msra.mxu0 0.0
    %699 = vmatprep.subr.mxu0 0.0
    %700 = vmatpush1.msra.mxu0 0.0
    %701 = vmatprep.subr.mxu0 0.0
    %702 = vmatpush1.msra.mxu0 0.0
    %703 = vmatprep.subr.mxu0 0.0
    %704 = vmatpush1.msra.mxu0 0.0
    %705 = vmatprep.subr.mxu0 0.0
    %706 = vmatpush1.msra.mxu0 0.0
    %707 = vmatprep.subr.mxu0 0.0
    %708 = vmatpush1.msra.mxu0 0.0
    %709 = vmatprep.subr.mxu0 0.0
    %710 = vmatpush1.msra.mxu0 0.0
    %711 = vmatprep.subr.mxu0 0.0
    %712 = vmatpush1.msra.mxu0 0.0
    %713 = vmatprep.subr.mxu0 0.0
    %714 = vmatpush1.msra.mxu0 0.0
    %715 = vmatprep.subr.mxu0 0.0
    %716 = vmatpush1.msra.mxu0 0.0
    %717 = vmatprep.subr.mxu0 0.0
    %718 = vmatpush1.msra.mxu0 0.0
    %719 = vmatprep.subr.mxu0 0.0
    %720 = vmatpush1.msra.mxu0 0.0
    %721 = vmatprep.subr.mxu0 0.0
    %722 = vmatpush1.msra.mxu0 0.0
    %723 = vmatprep.subr.mxu0 0.0
    %724 = vmatpush1.msra.mxu0 0.0
    %725 = vmatprep.subr.mxu0 0.0
    %726 = vmatpush1.msra.mxu0 0.0
    %727 = vmatprep.subr.mxu0 0.0
    %728 = vmatpush1.msra.mxu0 0.0
    %729 = vmatprep.subr.mxu0 0.0
    %730 = vmatpush1.msra.mxu0 0.0
    %731 = vmatprep.subr.mxu0 0.0
    %732 = vmatpush1.msra.mxu0 0.0
    %733 = vmatprep.subr.mxu0 0.0
    %734 = vmatpush1.msra.mxu0 0.0
    %735 = vmatprep.subr.mxu0 0.0
    %736 = vmatpush1.msra.mxu0 0.0
    %737 = vmatprep.subr.mxu0 0.0
    %738 = vmatpush1.msra.mxu0 0.0
    %739 = vmatprep.subr.mxu0 0.0
    %740 = vmatpush1.msra.mxu0 0.0
    %741 = vmatprep.subr.mxu0 0.0
    %742 = vmatpush1.msra.mxu0 0.0
    %743 = vmatprep.subr.mxu0 0.0
    %744 = vmatpush1.msra.mxu0 0.0
    %745 = vmatprep.subr.mxu0 0.0
    %746 = vmatpush1.msra.mxu0 0.0
    %747 = vmatprep.subr.mxu0 0.0
    %748 = vmatpush1.msra.mxu0 0.0
    %749 = vmatprep.mubr.f32.mxu0 0.0
    %750 = vmatmul.mubr.f32.gmra.mrb[0].mxu0 %v683
    %v751 = vpop.f32.mrb[0].mxu0
    %v752 = vadd.f32 0.0, %v751
    %v753 = vpop.f32.mrb[0].mxu0
    %754 = vdwg.mxu0
    %v756 = vrot.slane %v752, 3
    %v758 = vadd.f32 %v244, %v756
    %v759 = vtanh.pop %v758
    %vm760 = vcmp.eq.s32.totalorder %v248, 5
    %vm761 = vmand %vm760, %vm249
    %v762 = vlaneseq
    %v763 = vshrl.u32 %v762, 7
    %v764 = vsub.s32 5, %v763
    %v765 = vrot.slane %v759, %v764
    %v766 = vsel %vm761, %v765, %v680
    %v768 = vrot.slane %v759, 5
    %v769 = vsel %vm251, %v768, 0
    %771 = vmatprep.subr.mxu0 0.0
    %772 = vmatpush1.msra.mxu0 %v33
    %773 = vmatprep.subr.mxu0 0.0
    %774 = vmatpush1.msra.mxu0 %v257
    %775 = vmatprep.subr.mxu0 0.0
    %776 = vmatpush1.msra.mxu0 0.0
    %777 = vmatprep.subr.mxu0 0.0
    %778 = vmatpush1.msra.mxu0 0.0
    %779 = vmatprep.subr.mxu0 0.0
    %780 = vmatpush1.msra.mxu0 0.0
    %781 = vmatprep.subr.mxu0 0.0
    %782 = vmatpush1.msra.mxu0 0.0
    %783 = vmatprep.subr.mxu0 0.0
    %784 = vmatpush1.msra.mxu0 0.0
    %785 = vmatprep.subr.mxu0 0.0
    %786 = vmatpush1.msra.mxu0 0.0
    %787 = vmatprep.subr.mxu0 0.0
    %788 = vmatpush1.msra.mxu0 0.0
    %789 = vmatprep.subr.mxu0 0.0
    %790 = vmatpush1.msra.mxu0 0.0
    %791 = vmatprep.subr.mxu0 0.0
    %792 = vmatpush1.msra.mxu0 0.0
    %793 = vmatprep.subr.mxu0 0.0
    %794 = vmatpush1.msra.mxu0 0.0
    %795 = vmatprep.subr.mxu0 0.0
    %796 = vmatpush1.msra.mxu0 0.0
    %797 = vmatprep.subr.mxu0 0.0
    %798 = vmatpush1.msra.mxu0 0.0
    %799 = vmatprep.subr.mxu0 0.0
    %800 = vmatpush1.msra.mxu0 0.0
    %801 = vmatprep.subr.mxu0 0.0
    %802 = vmatpush1.msra.mxu0 0.0
    %803 = vmatprep.subr.mxu0 0.0
    %804 = vmatpush1.msra.mxu0 0.0
    %805 = vmatprep.subr.mxu0 0.0
    %806 = vmatpush1.msra.mxu0 0.0
    %807 = vmatprep.subr.mxu0 0.0
    %808 = vmatpush1.msra.mxu0 0.0
    %809 = vmatprep.subr.mxu0 0.0
    %810 = vmatpush1.msra.mxu0 0.0
    %811 = vmatprep.subr.mxu0 0.0
    %812 = vmatpush1.msra.mxu0 0.0
    %813 = vmatprep.subr.mxu0 0.0
    %814 = vmatpush1.msra.mxu0 0.0
    %815 = vmatprep.subr.mxu0 0.0
    %816 = vmatpush1.msra.mxu0 0.0
    %817 = vmatprep.subr.mxu0 0.0
    %818 = vmatpush1.msra.mxu0 0.0
    %819 = vmatprep.subr.mxu0 0.0
    %820 = vmatpush1.msra.mxu0 0.0
    %821 = vmatprep.subr.mxu0 0.0
    %822 = vmatpush1.msra.mxu0 0.0
    %823 = vmatprep.subr.mxu0 0.0
    %824 = vmatpush1.msra.mxu0 0.0
    %825 = vmatprep.subr.mxu0 0.0
    %826 = vmatpush1.msra.mxu0 0.0
    %827 = vmatprep.subr.mxu0 0.0
    %828 = vmatpush1.msra.mxu0 0.0
    %829 = vmatprep.subr.mxu0 0.0
    %830 = vmatpush1.msra.mxu0 0.0
    %831 = vmatprep.subr.mxu0 0.0
    %832 = vmatpush1.msra.mxu0 0.0
    %833 = vmatprep.subr.mxu0 0.0
    %834 = vmatpush1.msra.mxu0 0.0
    %835 = vmatprep.mubr.f32.mxu0 0.0
    %836 = vmatmul.mubr.f32.gmra.mrb[0].mxu0 %v769
    %v837 = vpop.f32.mrb[0].mxu0
    %v838 = vadd.f32 0.0, %v837
    %v839 = vpop.f32.mrb[0].mxu0
    %840 = vdwg.mxu0
    %v842 = vrot.slane %v838, 2
    %v844 = vadd.f32 %v244, %v842
    %v845 = vtanh.pop %v844
    %vm846 = vcmp.eq.s32.totalorder %v248, 6
    %vm847 = vmand %vm846, %vm249
    %v848 = vlaneseq
    %v849 = vshrl.u32 %v848, 7
    %v850 = vsub.s32 6, %v849
    %v851 = vrot.slane %v845, %v850
    %v852 = vsel %vm847, %v851, %v766
    %v854 = vrot.slane %v845, 6
    %v855 = vsel %vm251, %v854, 0
    %857 = vmatprep.subr.mxu0 0.0
    %858 = vmatpush1.msra.mxu0 %v33
    %859 = vmatprep.subr.mxu0 0.0
    %860 = vmatpush1.msra.mxu0 %v257
    %861 = vmatprep.subr.mxu0 0.0
    %862 = vmatpush1.msra.mxu0 0.0
    %863 = vmatprep.subr.mxu0 0.0
    %864 = vmatpush1.msra.mxu0 0.0
    %865 = vmatprep.subr.mxu0 0.0
    %866 = vmatpush1.msra.mxu0 0.0
    %867 = vmatprep.subr.mxu0 0.0
    %868 = vmatpush1.msra.mxu0 0.0
    %869 = vmatprep.subr.mxu0 0.0
    %870 = vmatpush1.msra.mxu0 0.0
    %871 = vmatprep.subr.mxu0 0.0
    %872 = vmatpush1.msra.mxu0 0.0
    %873 = vmatprep.subr.mxu0 0.0
    %874 = vmatpush1.msra.mxu0 0.0
    %875 = vmatprep.subr.mxu0 0.0
    %876 = vmatpush1.msra.mxu0 0.0
    %877 = vmatprep.subr.mxu0 0.0
    %878 = vmatpush1.msra.mxu0 0.0
    %879 = vmatprep.subr.mxu0 0.0
    %880 = vmatpush1.msra.mxu0 0.0
    %881 = vmatprep.subr.mxu0 0.0
    %882 = vmatpush1.msra.mxu0 0.0
    %883 = vmatprep.subr.mxu0 0.0
    %884 = vmatpush1.msra.mxu0 0.0
    %885 = vmatprep.subr.mxu0 0.0
    %886 = vmatpush1.msra.mxu0 0.0
    %887 = vmatprep.subr.mxu0 0.0
    %888 = vmatpush1.msra.mxu0 0.0
    %889 = vmatprep.subr.mxu0 0.0
    %890 = vmatpush1.msra.mxu0 0.0
    %891 = vmatprep.subr.mxu0 0.0
    %892 = vmatpush1.msra.mxu0 0.0
    %893 = vmatprep.subr.mxu0 0.0
    %894 = vmatpush1.msra.mxu0 0.0
    %895 = vmatprep.subr.mxu0 0.0
    %896 = vmatpush1.msra.mxu0 0.0
    %897 = vmatprep.subr.mxu0 0.0
    %898 = vmatpush1.msra.mxu0 0.0
    %899 = vmatprep.subr.mxu0 0.0
    %900 = vmatpush1.msra.mxu0 0.0
    %901 = vmatprep.subr.mxu0 0.0
    %902 = vmatpush1.msra.mxu0 0.0
    %903 = vmatprep.subr.mxu0 0.0
    %904 = vmatpush1.msra.mxu0 0.0
    %905 = vmatprep.subr.mxu0 0.0
    %906 = vmatpush1.msra.mxu0 0.0
    %907 = vmatprep.subr.mxu0 0.0
    %908 = vmatpush1.msra.mxu0 0.0
    %909 = vmatprep.subr.mxu0 0.0
    %910 = vmatpush1.msra.mxu0 0.0
    %911 = vmatprep.subr.mxu0 0.0
    %912 = vmatpush1.msra.mxu0 0.0
    %913 = vmatprep.subr.mxu0 0.0
    %914 = vmatpush1.msra.mxu0 0.0
    %915 = vmatprep.subr.mxu0 0.0
    %916 = vmatpush1.msra.mxu0 0.0
    %917 = vmatprep.subr.mxu0 0.0
    %918 = vmatpush1.msra.mxu0 0.0
    %919 = vmatprep.subr.mxu0 0.0
    %920 = vmatpush1.msra.mxu0 0.0
    %921 = vmatprep.mubr.f32.mxu0 0.0
    %922 = vmatmul.mubr.f32.gmra.mrb[0].mxu0 %v855
    %v923 = vpop.f32.mrb[0].mxu0
    %v924 = vadd.f32 0.0, %v923
    %v925 = vpop.f32.mrb[0].mxu0
    %926 = vdwg.mxu0
    %v928 = vrot.slane %v924, 1
    %v930 = vadd.f32 %v244, %v928
    %v931 = vtanh.pop %v930
    %vm932 = vcmp.eq.s32.totalorder %v248, 7
    %vm933 = vmand %vm932, %vm249
    %v934 = vlaneseq
    %v935 = vshrl.u32 %v934, 7
    %v936 = vsub.s32 7, %v935
    %v937 = vrot.slane %v931, %v936
    %v938 = vsel %vm933, %v937, %v852
    %v939 = vmul.f32 %v938, 0.01
    %v940 = vmax.f32 %v938, %v939
    %v941 = vlaneseq
    %v942 = vshrl.u32 %v941, 7
    %v943 = vsub.s32 0, %v942
    %v944 = vrot.slane %v38, %v943
    %vm945 = vcmask 162816
    %v947 = vsel %vm945, %v940, 0
    %vm949 = vcmask 1043456
    %v951 = vsel %vm949, %v37, 0
    %953 = vmatprep.subr.mxu0 0.0
    %954 = vmatpush1.msra.mxu0 %v35
    %955 = vmatprep.subr.mxu0 0.0
    %956 = vmatpush1.msra.mxu0 %v36
    %957 = vmatprep.subr.mxu0 0.0
    %958 = vmatpush1.msra.mxu0 %v951
    %959 = vmatprep.subr.mxu0 0.0
    %960 = vmatpush1.msra.mxu0 0.0
    %961 = vmatprep.subr.mxu0 0.0
    %962 = vmatpush1.msra.mxu0 0.0
    %963 = vmatprep.subr.mxu0 0.0
    %964 = vmatpush1.msra.mxu0 0.0
    %965 = vmatprep.subr.mxu0 0.0
    %966 = vmatpush1.msra.mxu0 0.0
    %967 = vmatprep.subr.mxu0 0.0
    %968 = vmatpush1.msra.mxu0 0.0
    %969 = vmatprep.subr.mxu0 0.0
    %970 = vmatpush1.msra.mxu0 0.0
    %971 = vmatprep.subr.mxu0 0.0
    %972 = vmatpush1.msra.mxu0 0.0
    %973 = vmatprep.subr.mxu0 0.0
    %974 = vmatpush1.msra.mxu0 0.0
    %975 = vmatprep.subr.mxu0 0.0
    %976 = vmatpush1.msra.mxu0 0.0
    %977 = vmatprep.subr.mxu0 0.0
    %978 = vmatpush1.msra.mxu0 0.0
    %979 = vmatprep.subr.mxu0 0.0
    %980 = vmatpush1.msra.mxu0 0.0
    %981 = vmatprep.subr.mxu0 0.0
    %982 = vmatpush1.msra.mxu0 0.0
    %983 = vmatprep.subr.mxu0 0.0
    %984 = vmatpush1.msra.mxu0 0.0
    %985 = vmatprep.subr.mxu0 0.0
    %986 = vmatpush1.msra.mxu0 0.0
    %987 = vmatprep.subr.mxu0 0.0
    %988 = vmatpush1.msra.mxu0 0.0
    %989 = vmatprep.subr.mxu0 0.0
    %990 = vmatpush1.msra.mxu0 0.0
    %991 = vmatprep.subr.mxu0 0.0
    %992 = vmatpush1.msra.mxu0 0.0
    %993 = vmatprep.subr.mxu0 0.0
    %994 = vmatpush1.msra.mxu0 0.0
    %995 = vmatprep.subr.mxu0 0.0
    %996 = vmatpush1.msra.mxu0 0.0
    %997 = vmatprep.subr.mxu0 0.0
    %998 = vmatpush1.msra.mxu0 0.0
    %999 = vmatprep.subr.mxu0 0.0
    %1000 = vmatpush1.msra.mxu0 0.0
    %1001 = vmatprep.subr.mxu0 0.0
    %1002 = vmatpush1.msra.mxu0 0.0
    %1003 = vmatprep.subr.mxu0 0.0
    %1004 = vmatpush1.msra.mxu0 0.0
    %1005 = vmatprep.subr.mxu0 0.0
    %1006 = vmatpush1.msra.mxu0 0.0
    %1007 = vmatprep.subr.mxu0 0.0
    %1008 = vmatpush1.msra.mxu0 0.0
    %1009 = vmatprep.subr.mxu0 0.0
    %1010 = vmatpush1.msra.mxu0 0.0
    %1011 = vmatprep.subr.mxu0 0.0
    %1012 = vmatpush1.msra.mxu0 0.0
    %1013 = vmatprep.subr.mxu0 0.0
    %1014 = vmatpush1.msra.mxu0 0.0
    %1015 = vmatprep.subr.mxu0 0.0
    %1016 = vmatpush1.msra.mxu0 0.0
    %1017 = vmatprep.mubr.f32.mxu0 0.0
    %1018 = vmatmul.mubr.f32.gmra.mrb[0].mxu0 %v947
    %v1019 = vpop.f32.mrb[0].mxu0
    %v1020 = vadd.f32 %v944, %v1019
    %v1021 = vpop.f32.mrb[0].mxu0
    %1022 = vdwg.mxu0
    %v1023 = vmul.f32 %v1020, 0.01
    %v1024 = vmax.f32 %v1020, %v1023
    %vm1025 = vcmask 15360
    %1026 = vst.msk [vmem:[%s3] sm:$0xff] %vm1025, %v1024
    %vm1027 = vcmask 80903
    %1028 = vst.msk [vmem:[#allocation5 - $0x7] sm:$0x80] %vm1027, %v931
    // Predicated region
    $region18: #{_forward.1} parent=1 // pred_check
      _
    $region19: #{_forward.1} parent=1 // pred_check_branch
      %1030 = sbr.rel (0) target = $region21
    $region20: #{_forward.1} parent=1 // pred_region
      _
    $region21: #{_forward.1} parent=1 // pred_fallthru
      _
    // Predicated region
    $region22: #{_forward.1} parent=1 // pred_check
      _
    $region23: #{_forward.1} parent=1 // pred_check_branch
      %1032 = sbr.rel (0) target = $region25
    $region24: #{_forward.1} parent=1 // pred_region
      %s1034 = ssub.s32 16, 16
      %1035 = vsyncadd [#allocation4], %s1034
      %s1037 = sshll.u32 [#allocation5], 4
      %s1038 = int_to_ptr.vmem [resolvable:$true] %s1037
      %1040 = dma.vmem_to_hbm [thread:$0]  %s1038, 16, %s4, [#allocation4]
    $region25: #{_forward.1} parent=1 // pred_fallthru
      _
    // Predicated region
    $region26: #{_forward.1} parent=1 // pred_check
      _
    $region27: #{_forward.1} parent=1 // pred_check_branch
      %1042 = sbr.rel (0) target = $region29
    $region28: #{_forward.1} parent=1 // pred_region
      _
    $region29: #{_forward.1} parent=1 // pred_fallthru
      _
    // Predicated region
    $region30: #{_forward.1} parent=1 // pred_check
      _
    $region31: #{_forward.1} parent=1 // pred_check_branch
      %1044 = sbr.rel (0) target = $region33
    $region32: #{_forward.1} parent=1 // pred_region
      %1045 = dma.done [#allocation4], 16
    $region33: #{_forward.1} parent=1 // pred_fallthru
      _
    %1046 = vsyncpa [#allocation3], 1
    %1047 = vsyncpa [#allocation4], 1

</llo_original>
